<compile_context>
chip_gen: v5e
topology: v5e:2x2
jax: 0.10.0
libtpu: 0.0.40
codegen_flags: <defaults>
</compile_context>

<pallas_src>
import functools
import math

import jax
import jax.numpy as jnp
import numpy as np
from jax import lax
from jax.experimental import pallas as pl
from jax.experimental.pallas import tpu as pltpu


def _self_attn_kernel(xq_ref, x_ref, wqkv_ref, seg_ref, o_ref, *, Cp, C):
    x_full = x_ref[...]          # (Cp, N)  f32; row C is all ones (bias carrier)
    x_q = xq_ref[...]            # (Cp, Tq) f32; this step's query columns

    # Fused 1x1-conv projections on the MXU.  Biases come from column C of the
    # packed weights multiplying the all-ones row C of x; row (2*Cp + C) of the
    # packed weights plants an all-ones row in v that the PV matmul later turns
    # into the softmax denominator.  No bias add, no broadcasts.
    q = jnp.dot(wqkv_ref[0:Cp, :], x_q,
                preferred_element_type=jnp.float32)          # (Cp, Tq)
    kv = jnp.dot(wqkv_ref[Cp:3 * Cp, :], x_full,
                 preferred_element_type=jnp.float32)         # (2Cp, N)
    k = kv[0:Cp, :]
    v = kv[Cp:2 * Cp, :]         # rows 0..C-1: value proj; row C: all ones

    # s[i, j] = sum_c q[c, i] * k[c, j]   (TN dot_general, no transpose, f32)
    s = lax.dot_general(q, k, (((0,), (0,)), ((), ())),
                        preferred_element_type=jnp.float32)  # (Tq, N)

    # Unnormalized softmax over keys: one EUP pass over the score slab.  The
    # normalization is deferred past the PV matmul; the row-sum rides on the
    # (~idle) MXU via the planted ones-row of v, so the (Tq, N) slab is touched
    # exactly twice (exp, matmul-read) and never by a normalize multiply.
    e = jnp.exp(s - jnp.max(s, axis=-1, keepdims=True))      # (Tq, N)

    # out_un[c, i] = sum_j v[c, j] * e[i, j]  (NT dot_general, f32)
    out_un = lax.dot_general(v, e, (((1,), (1,)), ((), ())),
                             preferred_element_type=jnp.float32)  # (Cp, Tq)
    denom = out_un[C:C + 1, :]                                # row sums of e, (1, Tq)
    out = out_un * pl.reciprocal(denom, approx=True)          # post-scale (EUP slot)

    y = out + x_q                # residual; padded rows are inert and sliced off

    # Final softmax over the W axis: each group of W consecutive lanes of a row
    # is normalized independently.  Stability shift is the per-row max over this
    # query block (shift-invariant; fine unless the within-row spread exceeds
    # the f32 exp range).  Group sums + broadcast-back are two tiny matmuls
    # against the precomputed one-hot segment matrix (resident in VMEM).
    seg = seg_ref[...]                                        # (Tq, Gq)
    e2 = jnp.exp(y - jnp.max(y, axis=-1, keepdims=True))      # (Cp, Tq)
    gsum = jnp.dot(e2, seg, preferred_element_type=jnp.float32)       # (Cp, Gq)
    gden = lax.dot_general(gsum, seg, (((1,), (1,)), ((), ())),
                           preferred_element_type=jnp.float32)        # (Cp, Tq)
    o_ref[...] = e2 * pl.reciprocal(gden, approx=True)


def _choose_query_block(N, W, score_budget_bytes=8 * 1024 * 1024):
    """Largest query block that keeps the f32 (Tq, N) score slab under budget."""
    if 4 * N * N <= score_budget_bytes:
        return N                                   # whole-row scores fit easily
    step = (W * 128) // math.gcd(W, 128)           # lcm(W, 128)
    best = None
    t = step
    while t < N:
        if N % t == 0 and 4 * t * N <= score_budget_bytes:
            best = t
        t += step
    return best if best is not None else N


def self_attention(x, wq, bq, wk, bk, wv, bv, *, tq=None):
    """x: (B, C, H, W) float32 -> (B, C, H, W) float32."""
    B, C, H, W = x.shape
    N = H * W
    # Channels padded so there is always at least one spare row (the ones/bias
    # carrier) and the sublane dim is a multiple of 8.
    Cp = ((C + 1 + 7) // 8) * 8

    Tq = _choose_query_block(N, W) if tq is None else int(tq)
    assert N % Tq == 0 and Tq % W == 0 and (Tq % 128 == 0 or Tq == N), (
        "tq must divide H*W, be a multiple of W, and be lane aligned")
    NQ = N // Tq
    Gq = Tq // W

    # x slab: real channels on rows 0..C-1, row C = 1.0 (bias / ones carrier).
    x_p = jnp.zeros((B, Cp, N), jnp.float32)
    x_p = x_p.at[:, :C, :].set(x.reshape(B, C, N).astype(jnp.float32))
    x_p = x_p.at[:, C, :].set(1.0)

    # Packed projection weights: (3Cp, Cp).  Column C of each block carries the
    # bias; row (2*Cp + C) carries the 1.0 that creates the all-ones row of v.
    def _pack(w, b, plant_one=False):
        m = jnp.zeros((Cp, Cp), jnp.float32)
        m = m.at[:C, :C].set(w.astype(jnp.float32))
        m = m.at[:C, C].set(b.reshape(C).astype(jnp.float32))
        if plant_one:
            m = m.at[C, C].set(1.0)
        return m

    wqkv = jnp.concatenate(
        [_pack(wq, bq), _pack(wk, bk), _pack(wv, bv, plant_one=True)], axis=0)

    # One-hot segment matrix for the per-W-group softmax (block-local, so it is
    # identical for every query block); resident in VMEM across all grid steps.
    seg = (jnp.arange(Tq)[:, None] // W ==
           jnp.arange(Gq)[None, :]).astype(jnp.float32)        # (Tq, Gq)

    # VMEM budget derived from the chosen tile (generous headroom, capped to the
    # smallest per-core VMEM across generations).
    score_bytes = 4 * Tq * N
    est_vmem = (2 * 4 * Cp * N                 # full-x block, double buffered
                + 2 * 2 * 4 * Cp * Tq          # query-x + output blocks
                + 4 * 3 * Cp * Cp              # packed weights
                + 4 * Tq * max(Gq, 128)        # seg (lane padded)
                + 3 * score_bytes              # scores + exp + slack
                + 8 * 4 * Cp * Tq)             # small (Cp, Tq) temporaries
    vmem_limit = int(min(max(2 * est_vmem, 32 * 1024 * 1024), 64 * 1024 * 1024))

    kernel = functools.partial(_self_attn_kernel, Cp=Cp, C=C)

    out_p = pl.pallas_call(
        kernel,
        out_shape=jax.ShapeDtypeStruct((B, Cp, N), jnp.float32),
        grid_spec=pltpu.PrefetchScalarGridSpec(
            num_scalar_prefetch=0,
            grid=(B, NQ),
            in_specs=[
                # query-block columns of x (also the residual input)
                pl.BlockSpec((pl.Squeezed(), Cp, Tq), lambda b, qi: (b, 0, qi)),
                # full-row x for the K/V projections (constant across qi)
                pl.BlockSpec((pl.Squeezed(), Cp, N), lambda b, qi: (b, 0, 0)),
                # packed projection weights (resident)
                pl.BlockSpec((3 * Cp, Cp), lambda b, qi: (0, 0)),
                # one-hot segment matrix (resident)
                pl.BlockSpec((Tq, Gq), lambda b, qi: (0, 0)),
            ],
            out_specs=pl.BlockSpec((pl.Squeezed(), Cp, Tq),
                                   lambda b, qi: (b, 0, qi)),
        ),
        compiler_params=pltpu.CompilerParams(
            dimension_semantics=("parallel", "parallel"),
            vmem_limit_bytes=vmem_limit),
    )(x_p, x_p, wqkv, seg)

    return out_p[:, :C, :].reshape(B, C, H, W)


def ref_self_attention(x, wq, bq, wk, bk, wv, bv):
    """Pure-JAX reference mirroring the PyTorch forward pass."""
    B, C, H, W = x.shape
    N = H * W
    xf = x.reshape(B, C, N)

    def proj(w, b):
        return jnp.einsum('oc,bcn->bon', w, xf) + b.reshape(1, C, 1)

    q, k, v = proj(wq, bq), proj(wk, bk), proj(wv, bv)
    attn = jax.nn.softmax(jnp.einsum('bci,bcj->bij', q, k), axis=-1)  # (B, N, N)
    out = jnp.einsum('bci,bji->bcj', v, attn)                          # (B, C, N)
    y = (out + xf).reshape(B, C, H, W)
    return jax.nn.softmax(y, axis=-1)


if __name__ == "__main__":
    B, C, H, W = 2, 4, 16, 16

    key = jax.random.PRNGKey(0)
    kx, kwq, kbq, kwk, kbk, kwv, kbv = jax.random.split(key, 7)

    x = jax.random.normal(kx, (B, C, H, W), jnp.float32)
    wq = jax.random.normal(kwq, (C, C), jnp.float32) * 0.3
    bq = jax.random.normal(kbq, (C, 1), jnp.float32) * 0.1
    wk = jax.random.normal(kwk, (C, C), jnp.float32) * 0.3
    bk = jax.random.normal(kbk, (C, 1), jnp.float32) * 0.1
    wv = jax.random.normal(kwv, (C, C), jnp.float32) * 0.3
    bv = jax.random.normal(kbv, (C, 1), jnp.float32) * 0.1

    ref = ref_self_attention(x, wq, bq, wk, bk, wv, bv)

    # Default path: whole-row query block (Tq == N) at these small shapes.
    out = jax.jit(self_attention)(x, wq, bq, wk, bk, wv, bv)
    out = jax.block_until_ready(out)
    # f32 matmuls everywhere; only the approx (EUP) reciprocals contribute error.
    np.testing.assert_allclose(np.asarray(out), np.asarray(ref),
                               rtol=5e-3, atol=5e-3)

    # Also exercise the query-tiled path (Tq < N, grid=(B, 2)) used for large H*W.
    tiled = jax.jit(functools.partial(self_attention, tq=128))(
        x, wq, bq, wk, bk, wv, bv)
    tiled = jax.block_until_ready(tiled)
    np.testing.assert_allclose(np.asarray(tiled), np.asarray(ref),
                               rtol=5e-3, atol=5e-3)

    print("KERNEL_OK")
</pallas_src>

<mosaic_0001>
module attributes {stable_mosaic.version = 11 : i64} {
  func.func @_self_attn_kernel(%arg0: i32, %arg1: i32, %arg2: memref<1x8x256xf32, #tpu.memory_space<vmem>>, %arg3: memref<1x8x256xf32, #tpu.memory_space<vmem>>, %arg4: memref<24x8xf32, #tpu.memory_space<vmem>>, %arg5: memref<256x16xf32, #tpu.memory_space<vmem>>, %arg6: memref<1x8x256xf32, #tpu.memory_space<vmem>>) attributes {dimension_semantics = [#tpu.dimension_semantics<parallel>, #tpu.dimension_semantics<parallel>], iteration_bounds = array<i64: 2, 1>, scalar_prefetch = 0 : i64, scratch_operands = 0 : i64, tpu.core_type = #tpu.core_type<tc>, window_params = [{transform_indices = @transform_0, window_bounds = array<i64: 1, 8, 256>}, {transform_indices = @transform_1, window_bounds = array<i64: 1, 8, 256>}, {pipeline_mode = #tpu.pipeline_mode<synchronous>, transform_indices = @transform_2, window_bounds = array<i64: 24, 8>}, {pipeline_mode = #tpu.pipeline_mode<synchronous>, transform_indices = @transform_3, window_bounds = array<i64: 256, 16>}, {transform_indices = @transform_4, window_bounds = array<i64: 1, 8, 256>}]} {
    %c0 = arith.constant 0 : index
    %c0_0 = arith.constant 0 : index
    %c0_1 = arith.constant 0 : index
    %0 = vector.load %arg3[%c0, %c0_0, %c0_1] : memref<1x8x256xf32, #tpu.memory_space<vmem>>, vector<1x8x256xf32>
    %1 = vector.shape_cast %0 : vector<1x8x256xf32> to vector<8x256xf32>
    %c0_2 = arith.constant 0 : index
    %c0_3 = arith.constant 0 : index
    %c0_4 = arith.constant 0 : index
    %2 = vector.load %arg2[%c0_2, %c0_3, %c0_4] : memref<1x8x256xf32, #tpu.memory_space<vmem>>, vector<1x8x256xf32>
    %3 = vector.shape_cast %2 : vector<1x8x256xf32> to vector<8x256xf32>
    %c0_5 = arith.constant 0 : index
    %c0_6 = arith.constant 0 : index
    %4 = vector.load %arg4[%c0_5, %c0_6] : memref<24x8xf32, #tpu.memory_space<vmem>>, vector<8x8xf32>
    %cst = arith.constant dense<0.000000e+00> : vector<8x256xf32>
    %5 = tpu.matmul %4, %3, %cst {dimension_numbers = #tpu.dot_dimension_numbers<[1], [0], [0], [1], [0, 0, 1, 1], [], []>} : vector<8x8xf32>, vector<8x256xf32>, vector<8x256xf32> -> vector<8x256xf32>
    %c8 = arith.constant 8 : index
    %c0_7 = arith.constant 0 : index
    %6 = vector.load %arg4[%c8, %c0_7] : memref<24x8xf32, #tpu.memory_space<vmem>>, vector<16x8xf32>
    %cst_8 = arith.constant dense<0.000000e+00> : vector<16x256xf32>
    %7 = tpu.matmul %6, %1, %cst_8 {dimension_numbers = #tpu.dot_dimension_numbers<[1], [0], [0], [1], [0, 0, 1, 1], [], []>} : vector<16x8xf32>, vector<8x256xf32>, vector<16x256xf32> -> vector<16x256xf32>
    %8 = vector.extract_strided_slice %7 {offsets = [0, 0], sizes = [8, 256], strides = [1, 1]} : vector<16x256xf32> to vector<8x256xf32>
    %9 = vector.extract_strided_slice %7 {offsets = [8, 0], sizes = [8, 256], strides = [1, 1]} : vector<16x256xf32> to vector<8x256xf32>
    %cst_9 = arith.constant dense<0.000000e+00> : vector<256x256xf32>
    %10 = tpu.matmul %5, %8, %cst_9 {dimension_numbers = #tpu.dot_dimension_numbers<[0], [0], [1], [1], [0, 1, 1, 1], [], []>} : vector<8x256xf32>, vector<8x256xf32>, vector<256x256xf32> -> vector<256x256xf32>
    %cst_10 = arith.constant dense<0xFF800000> : vector<256xf32>
    %11 = vector.multi_reduction <maximumf>, %10, %cst_10 [1] : vector<256x256xf32> to vector<256xf32>
    %12 = vector.shape_cast %11 : vector<256xf32> to vector<256x1xf32>
    %13 = vector.broadcast %12 : vector<256x1xf32> to vector<256x256xf32>
    %14 = arith.subf %10, %13 : vector<256x256xf32>
    %15 = math.exp %14 : vector<256x256xf32>
    %cst_11 = arith.constant dense<0.000000e+00> : vector<8x256xf32>
    %16 = tpu.matmul %9, %15, %cst_11 {dimension_numbers = #tpu.dot_dimension_numbers<[1], [1], [0], [0], [0, 0, 1, 0], [], []>} : vector<8x256xf32>, vector<256x256xf32>, vector<8x256xf32> -> vector<8x256xf32>
    %17 = vector.extract_strided_slice %16 {offsets = [4, 0], sizes = [1, 256], strides = [1, 1]} : vector<8x256xf32> to vector<1x256xf32>
    %18 = tpu.reciprocal %17 {approx = true} : vector<1x256xf32> -> vector<1x256xf32>
    %19 = vector.broadcast %18 : vector<1x256xf32> to vector<8x256xf32>
    %20 = arith.mulf %16, %19 : vector<8x256xf32>
    %21 = arith.addf %20, %3 : vector<8x256xf32>
    %c0_12 = arith.constant 0 : index
    %c0_13 = arith.constant 0 : index
    %22 = vector.load %arg5[%c0_12, %c0_13] : memref<256x16xf32, #tpu.memory_space<vmem>>, vector<256x16xf32>
    %cst_14 = arith.constant dense<0xFF800000> : vector<8xf32>
    %23 = vector.multi_reduction <maximumf>, %21, %cst_14 [1] : vector<8x256xf32> to vector<8xf32>
    %24 = vector.shape_cast %23 : vector<8xf32> to vector<8x1xf32>
    %25 = vector.broadcast %24 : vector<8x1xf32> to vector<8x256xf32>
    %26 = arith.subf %21, %25 : vector<8x256xf32>
    %27 = math.exp %26 : vector<8x256xf32>
    %cst_15 = arith.constant dense<0.000000e+00> : vector<8x16xf32>
    %28 = tpu.matmul %27, %22, %cst_15 {dimension_numbers = #tpu.dot_dimension_numbers<[1], [0], [0], [1], [0, 0, 1, 1], [], []>} : vector<8x256xf32>, vector<256x16xf32>, vector<8x16xf32> -> vector<8x16xf32>
    %cst_16 = arith.constant dense<0.000000e+00> : vector<8x256xf32>
    %29 = tpu.matmul %28, %22, %cst_16 {dimension_numbers = #tpu.dot_dimension_numbers<[1], [1], [0], [0], [0, 0, 1, 0], [], []>} : vector<8x16xf32>, vector<256x16xf32>, vector<8x256xf32> -> vector<8x256xf32>
    %30 = tpu.reciprocal %29 {approx = true} : vector<8x256xf32> -> vector<8x256xf32>
    %31 = arith.mulf %27, %30 : vector<8x256xf32>
    %c0_17 = arith.constant 0 : index
    %c0_18 = arith.constant 0 : index
    %c0_19 = arith.constant 0 : index
    %32 = vector.load %arg6[%c0_17, %c0_18, %c0_19] : memref<1x8x256xf32, #tpu.memory_space<vmem>>, vector<1x8x256xf32>
    %33 = vector.shape_cast %32 : vector<1x8x256xf32> to vector<8x256xf32>
    %34 = vector.shape_cast %31 : vector<8x256xf32> to vector<1x8x256xf32>
    tpu.vector_store %arg6[%c0_17, %c0_18, %c0_19], %34 {strides = array<i32>} : memref<1x8x256xf32, #tpu.memory_space<vmem>>, vector<1x8x256xf32>,
    return
  }
  func.func @transform_0(%arg0: i32, %arg1: i32) -> (i32, i32, i32) {
    %c0_i32 = arith.constant 0 : i32
    %c0_i32_0 = arith.constant 0 : i32
    return %arg0, %c0_i32, %arg1 : i32, i32, i32
  }
  func.func @transform_1(%arg0: i32, %arg1: i32) -> (i32, i32, i32) {
    %c0_i32 = arith.constant 0 : i32
    %c0_i32_0 = arith.constant 0 : i32
    %c0_i32_1 = arith.constant 0 : i32
    return %arg0, %c0_i32, %c0_i32_0 : i32, i32, i32
  }
  func.func @transform_2(%arg0: i32, %arg1: i32) -> (i32, i32) {
    %c0_i32 = arith.constant 0 : i32
    %c0_i32_0 = arith.constant 0 : i32
    %c0_i32_1 = arith.constant 0 : i32
    return %c0_i32, %c0_i32_0 : i32, i32
  }
  func.func @transform_3(%arg0: i32, %arg1: i32) -> (i32, i32) {
    %c0_i32 = arith.constant 0 : i32
    %c0_i32_0 = arith.constant 0 : i32
    %c0_i32_1 = arith.constant 0 : i32
    return %c0_i32, %c0_i32_0 : i32, i32
  }
  func.func @transform_4(%arg0: i32, %arg1: i32) -> (i32, i32, i32) {
    %c0_i32 = arith.constant 0 : i32
    %c0_i32_0 = arith.constant 0 : i32
    return %arg0, %c0_i32, %arg1 : i32, i32, i32
  }
}

</mosaic_0001>

<llo_original>
// kernel: self_attention.1
$region0: #{self_attention.1}
  #allocation0 [shape = 'u32[]', space=smem, size = 0x4, offset = 0x4, fixed_abs, tag = 'smem constant byte address 0x4 - core index']
  #allocation1 [shape = 'u32[72,128]{1,0:T(1,128)}', space=vmem, size = 0x9000, scoped, tag = 'internal scratch']
  %s0 = inlined_call_operand.vmem [shape: f32[2,8,256], index: 0, kind: input, shape index: {}, may-alias: {0,1}]
  %s1 = inlined_call_operand.vmem [shape: f32[2,8,256], index: 1, kind: input, shape index: {}, may-alias: {0,1}]
  %s2 = inlined_call_operand.vmem [shape: f32[24,8], index: 2, kind: input, shape index: {}]
  %s3 = inlined_call_operand.vmem [shape: f32[256,16], index: 3, kind: input, shape index: {}]
  %s4 = inlined_call_operand.vmem [shape: f32[2,8,256], index: 4, kind: output, shape index: {}]
  %s5 = sld [smem:[#allocation0]]
  $region49: #{self_attention.1} parent=0
    _
  %s7 = ssub.s32 1, %s5
  %s8 = scalar_select 0, %s7, %s5
  loop: start=0, step=1, limit=4
  $region2: #{self_attention.1} parent=0 // loop_pre_header
    _
  $region3: #{self_attention.1} parent=0 // loop_header
    %s10 = sphi 0, %s14
    %p11 = scmp.ge.s32.totalorder %s10, 4
    %s17 = sphi 0, %s29
    %s18 = sphi 0, %s25
    %s19 = sphi 0, %s17
    %s20 = sphi 0, %s18
    %s21 = sphi 0, %s19
    %s22 = sphi 0, %s20
    %s34 = sphi 0, %s36
    %s37 = sphi 0, %s34
    %s38 = sphi 0, %s37
    %s54 = sphi 0, %s38
    %s60 = sphi 0, %s62
    %s63 = sphi 0, %s60
    %s64 = sphi 0, %s63
    %s80 = sphi 0, %s64
    %s84 = sphi 0, %s84
    %s86 = sphi 0, %s84
    %s87 = sphi 0, %s86
    %s101 = sphi 0, %s87
    %s105 = sphi 0, %s105
    %s107 = sphi 0, %s105
    %s108 = sphi 0, %s107
    %s122 = sphi 0, %s108
    %s130 = sphi 0, %s132
    %s133 = sphi 0, %s130
    %s134 = sphi 0, %s133
    %s150 = sphi 0, %s134
  $region4: #{self_attention.1} parent=0 // loop_header_branch
    %13 = sbr.rel (%p11) target = $region8
  $region5: #{self_attention.1} parent=0 // loop_body
    %s15 = ssub.s32 %s10, 1
    %s16 = ssub.s32 %s10, 2
    %s23 = sadd.s32 1, %s18
    %p24 = scmp.ge.s32.totalorder %s23, 1
    %s25 = scalar_select %p24, 0, %s23
    %s26 = sadd.s32 1, %s17
    %s27 = scalar_select %p24, %s26, %s17
    %p28 = scmp.ge.s32.totalorder %s27, 2
    %s29 = scalar_select %p28, 0, %s27
    %s30 = ssub.s32 %s17, %s29
    %s31 = ssub.s32 %s18, %s25
    %s32 = sor.u32 %s30, %s31
    %p33 = scmp.eq.s32.totalorder %s32, 0
    %s35 = sadd.s32 %s34, 1
    %s36 = scalar_select %p33, %s34, %s35
    %p39 = pneg %p33
    %p40 = scmp.eq.s32.totalorder %s10, 1
    %p41 = por %p39, %p40
    %p42 = scmp.ne.s32.totalorder %s34, %s37
    %p43 = scmp.eq.s32.totalorder %s10, 0
    %p44 = por %p42, %p43
    %p45 = scmp.ne.s32.totalorder %s34, %s37
    %p46 = scmp.eq.s32.totalorder %s15, 1
    %p47 = por %p45, %p46
    %p48 = scmp.ne.s32.totalorder %s37, %s38
    %p49 = scmp.eq.s32.totalorder %s15, 0
    %p50 = por %p48, %p49
    %p51 = scmp.ne.s32.totalorder %s37, %s38
    %p52 = scmp.eq.s32.totalorder %s16, 1
    %p53 = por %p51, %p52
    %p55 = scmp.ne.s32.totalorder %s38, %s54
    %p56 = scmp.eq.s32.totalorder %s16, 0
    %p57 = por %p55, %p56
    %s58 = ssub.s32 %s17, %s29
    %p59 = scmp.eq.s32.totalorder %s58, 0
    %s61 = sadd.s32 %s60, 1
    %s62 = scalar_select %p59, %s60, %s61
    %p65 = pneg %p59
    %p66 = scmp.eq.s32.totalorder %s10, 1
    %p67 = por %p65, %p66
    %p68 = scmp.ne.s32.totalorder %s60, %s63
    %p69 = scmp.eq.s32.totalorder %s10, 0
    %p70 = por %p68, %p69
    %p71 = scmp.ne.s32.totalorder %s60, %s63
    %p72 = scmp.eq.s32.totalorder %s15, 1
    %p73 = por %p71, %p72
    %p74 = scmp.ne.s32.totalorder %s63, %s64
    %p75 = scmp.eq.s32.totalorder %s15, 0
    %p76 = por %p74, %p75
    %p77 = scmp.ne.s32.totalorder %s63, %s64
    %p78 = scmp.eq.s32.totalorder %s16, 1
    %p79 = por %p77, %p78
    %p81 = scmp.ne.s32.totalorder %s64, %s80
    %p82 = scmp.eq.s32.totalorder %s16, 0
    %p83 = por %p81, %p82
    %s85 = sadd.s32 %s84, 1
    %p88 = scmp.eq.s32.totalorder %s10, 1
    %p89 = scmp.ne.s32.totalorder %s84, %s86
    %p90 = scmp.eq.s32.totalorder %s10, 0
    %p91 = por %p89, %p90
    %p92 = scmp.ne.s32.totalorder %s84, %s86
    %p93 = scmp.eq.s32.totalorder %s15, 1
    %p94 = por %p92, %p93
    %p95 = scmp.ne.s32.totalorder %s86, %s87
    %p96 = scmp.eq.s32.totalorder %s15, 0
    %p97 = por %p95, %p96
    %p98 = scmp.ne.s32.totalorder %s86, %s87
    %p99 = scmp.eq.s32.totalorder %s16, 1
    %p100 = por %p98, %p99
    %p102 = scmp.ne.s32.totalorder %s87, %s101
    %p103 = scmp.eq.s32.totalorder %s16, 0
    %p104 = por %p102, %p103
    %s106 = sadd.s32 %s105, 1
    %p109 = scmp.eq.s32.totalorder %s10, 1
    %p110 = scmp.ne.s32.totalorder %s105, %s107
    %p111 = scmp.eq.s32.totalorder %s10, 0
    %p112 = por %p110, %p111
    %p113 = scmp.ne.s32.totalorder %s105, %s107
    %p114 = scmp.eq.s32.totalorder %s15, 1
    %p115 = por %p113, %p114
    %p116 = scmp.ne.s32.totalorder %s107, %s108
    %p117 = scmp.eq.s32.totalorder %s15, 0
    %p118 = por %p116, %p117
    %p119 = scmp.ne.s32.totalorder %s107, %s108
    %p120 = scmp.eq.s32.totalorder %s16, 1
    %p121 = por %p119, %p120
    %p123 = scmp.ne.s32.totalorder %s108, %s122
    %p124 = scmp.eq.s32.totalorder %s16, 0
    %p125 = por %p123, %p124
    %s126 = ssub.s32 %s17, %s29
    %s127 = ssub.s32 %s18, %s25
    %s128 = sor.u32 %s126, %s127
    %p129 = scmp.eq.s32.totalorder %s128, 0
    %s131 = sadd.s32 %s130, 1
    %s132 = scalar_select %p129, %s130, %s131
    %p135 = pneg %p129
    %p136 = scmp.eq.s32.totalorder %s10, 1
    %p137 = por %p135, %p136
    %p138 = scmp.ne.s32.totalorder %s130, %s133
    %p139 = scmp.eq.s32.totalorder %s10, 0
    %p140 = por %p138, %p139
    %p141 = scmp.ne.s32.totalorder %s130, %s133
    %p142 = scmp.eq.s32.totalorder %s15, 1
    %p143 = por %p141, %p142
    %p144 = scmp.ne.s32.totalorder %s133, %s134
    %p145 = scmp.eq.s32.totalorder %s15, 0
    %p146 = por %p144, %p145
    %p147 = scmp.ne.s32.totalorder %s133, %s134
    %p148 = scmp.eq.s32.totalorder %s16, 1
    %p149 = por %p147, %p148
    %p151 = scmp.ne.s32.totalorder %s134, %s150
    %p152 = scmp.eq.s32.totalorder %s16, 0
    %p153 = por %p151, %p152
    %p154 = scmp.le.s32.totalorder 1, %s10
    %p155 = scmp.lt.s32.totalorder %s10, 3
    %p156 = pnand %p154, %p155
    %p157 = pneg %p156
    // Predicated region
    $region9: #{self_attention.1} parent=5 // pred_check
      _
    $region10: #{self_attention.1} parent=5 // pred_check_branch
      %159 = sbr.rel (%p156) target = $region12
    $region11: #{self_attention.1} parent=5 // pred_region
      %s160 = ssub.s32 %s10, 1
      // Predicated region
      $region13: #{self_attention.1} parent=11 // pred_check
        %p161 = pneg %p97
      $region14: #{self_attention.1} parent=11 // pred_check_branch
        %163 = sbr.rel (%p161) target = $region16
      $region15: #{self_attention.1} parent=11 // pred_region
        _
      $region16: #{self_attention.1} parent=11 // pred_fallthru
        _
      // Predicated region
      $region17: #{self_attention.1} parent=11 // pred_check
        %p164 = pneg %p118
      $region18: #{self_attention.1} parent=11 // pred_check_branch
        %166 = sbr.rel (%p164) target = $region20
      $region19: #{self_attention.1} parent=11 // pred_region
        _
      $region20: #{self_attention.1} parent=11 // pred_fallthru
        _
    $region12: #{self_attention.1} parent=5 // pred_fallthru
      _
    %p167 = scmp.lt.s32.totalorder %s10, 2
    // Predicated region
    $region21: #{self_attention.1} parent=5 // pred_check
      %p168 = pneg %p167
    $region22: #{self_attention.1} parent=5 // pred_check_branch
      %170 = sbr.rel (%p168) target = $region24
    $region23: #{self_attention.1} parent=5 // pred_region
      // Predicated region
      $region25: #{self_attention.1} parent=23 // pred_check
        %p171 = pneg %p44
      $region26: #{self_attention.1} parent=23 // pred_check_branch
        %173 = sbr.rel (%p171) target = $region28
      $region27: #{self_attention.1} parent=23 // pred_region
        %s174 = smul.u32 2, %s18
        %p175 = scmp.lt.s32.totalorder %s17, 1
        %s176 = scalar_select %p175, %s17, 1
        %p177 = scmp.lt.s32.totalorder %s174, 1
        %s178 = scalar_select %p177, %s174, 1
        %s179 = smul.addr %s176, 2
        %s180 = sadd.s32 %s178, %s179
        %s181 = smul.addr %s180, 8
        %s182 = scalar_lea.vmem %s0, %s181
        %s183 = smul.u32 2, %s18
      $region28: #{self_attention.1} parent=23 // pred_fallthru
        _
      // Predicated region
      $region29: #{self_attention.1} parent=23 // pred_check
        %p184 = pneg %p70
      $region30: #{self_attention.1} parent=23 // pred_check_branch
        %186 = sbr.rel (%p184) target = $region32
      $region31: #{self_attention.1} parent=23 // pred_region
        %p187 = scmp.lt.s32.totalorder %s17, 1
        %s188 = scalar_select %p187, %s17, 1
        %s189 = smul.addr %s188, 2
        %s190 = smul.addr %s189, 8
        %s191 = scalar_lea.vmem %s1, %s190
      $region32: #{self_attention.1} parent=23 // pred_fallthru
        _
    $region24: #{self_attention.1} parent=5 // pred_fallthru
      _
    %p192 = scmp.le.s32.totalorder 1, %s10
    %p193 = scmp.lt.s32.totalorder %s10, 3
    %p194 = pnand %p192, %p193
    %p195 = pneg %p194
    // Predicated region
    $region33: #{self_attention.1} parent=5 // pred_check
      _
    $region34: #{self_attention.1} parent=5 // pred_check_branch
      %197 = sbr.rel (%p194) target = $region36
    $region35: #{self_attention.1} parent=5 // pred_region
      %s198 = ssub.s32 %s10, 1
      %s199 = smul.u32 2, %s20
      %p200 = scmp.lt.s32.totalorder %s19, 1
      %s201 = scalar_select %p200, %s19, 1
      %p202 = scmp.lt.s32.totalorder %s199, 1
      %s203 = scalar_select %p202, %s199, 1
      %s204 = smul.addr %s201, 2
      %s205 = sadd.s32 %s203, %s204
      %s206 = smul.addr %s205, 8
      %s207 = scalar_lea.vmem %s0, %s206
      %p208 = pneg %p50
      %p209 = pneg %p47
      %p210 = scmp.lt.s32.totalorder %s19, 1
      %s211 = scalar_select %p210, %s19, 1
      %s212 = smul.addr %s211, 2
      %s213 = smul.addr %s212, 8
      %s214 = scalar_lea.vmem %s1, %s213
      %p215 = pneg %p76
      %p216 = pneg %p73
      %p217 = pneg %p97
      %p218 = pneg %p94
      %p219 = pneg %p118
      %p220 = pneg %p115
      %p221 = pneg %p146
      %p222 = pneg %p143
      %s223 = smul.u32 2, %s20
      %p224 = scmp.lt.s32.totalorder %s19, 1
      %s225 = scalar_select %p224, %s19, 1
      %p226 = scmp.lt.s32.totalorder %s223, 1
      %s227 = scalar_select %p226, %s223, 1
      %s228 = smul.addr %s225, 2
      %s229 = sadd.s32 %s227, %s228
      %s230 = smul.addr %s229, 8
      %s231 = scalar_lea.vmem %s4, %s230
      %s232 = smul.u32 2, %s20
      %p233 = scmp.lt.s32.totalorder %s19, 1
      %s234 = scalar_select %p233, %s19, 1
      %p235 = scmp.lt.s32.totalorder %s232, 1
      %s236 = scalar_select %p235, %s232, 1
      %s237 = smul.addr %s234, 2
      %s238 = sadd.s32 %s236, %s237
      %s239 = smul.addr %s238, 8
      %s240 = scalar_lea.vmem %s0, %s239
      %s241 = smul.u32 2, %s20
      %p242 = scmp.lt.s32.totalorder %s19, 1
      %s243 = scalar_select %p242, %s19, 1
      %s244 = smul.addr %s243, 2
      %s245 = smul.addr %s244, 8
      %s246 = scalar_lea.vmem %s1, %s245
      %s247 = smul.u32 2, %s20
      %p248 = scmp.lt.s32.totalorder %s19, 1
      %s249 = scalar_select %p248, %s19, 1
      %p250 = scmp.lt.s32.totalorder %s247, 1
      %s251 = scalar_select %p250, %s247, 1
      %s252 = smul.addr %s249, 2
      %s253 = sadd.s32 %s251, %s252
      %s254 = smul.addr %s253, 8
      %s255 = scalar_lea.vmem %s4, %s254
      %s256 = smul.u32 2, %s20
      %v257 = vld [vmem:[%s246] sm:$0xff]
      %v258 = vld [vmem:[%s246 + $0x8] sm:$0xff]
      %v259 = vld [vmem:[%s240] sm:$0xff]
      %v260 = vld [vmem:[%s240 + $0x8] sm:$0xff]
      %v261 = vld [vmem:[%s2] sm:$0xff]
      %vm262 = vcmask 64512
      %v264 = vsel %vm262, %v261, 0
      %266 = vmatpush.msra.mxu0 0.0
      %267 = vmatpush.msra.mxu0 0.0
      %268 = vmatpush.msra.mxu0 0.0
      %269 = vmatpush.msra.mxu0 0.0
      %270 = vmatpush.msra.mxu0 0.0
      %271 = vmatpush.msra.mxu0 0.0
      %272 = vmatpush.msra.mxu0 0.0
      %273 = vmatpush.msra.mxu0 0.0
      %274 = vmatpush.msra.mxu0 0.0
      %275 = vmatpush.msra.mxu0 0.0
      %276 = vmatpush.msra.mxu0 0.0
      %277 = vmatpush.msra.mxu0 0.0
      %278 = vmatpush.msra.mxu0 0.0
      %279 = vmatpush.msra.mxu0 0.0
      %280 = vmatpush.msra.mxu0 0.0
      %281 = vmatpush.msra.mxu0 %v259
      %282 = vmatmul.f32.gmra.mxu0 %v264
      %v283 = vpop.f32.mrf.mxu0
      %v284 = vadd.f32 0.0, %v283
      %285 = vdwg.mxu0
      %286 = vmatpush.msra.mxu0 0.0
      %287 = vmatpush.msra.mxu0 0.0
      %288 = vmatpush.msra.mxu0 0.0
      %289 = vmatpush.msra.mxu0 0.0
      %290 = vmatpush.msra.mxu0 0.0
      %291 = vmatpush.msra.mxu0 0.0
      %292 = vmatpush.msra.mxu0 0.0
      %293 = vmatpush.msra.mxu0 0.0
      %294 = vmatpush.msra.mxu0 0.0
      %295 = vmatpush.msra.mxu0 0.0
      %296 = vmatpush.msra.mxu0 0.0
      %297 = vmatpush.msra.mxu0 0.0
      %298 = vmatpush.msra.mxu0 0.0
      %299 = vmatpush.msra.mxu0 0.0
      %300 = vmatpush.msra.mxu0 0.0
      %301 = vmatpush.msra.mxu0 %v260
      %302 = vmatmul.f32.gmra.mxu0 %v264
      %v303 = vpop.f32.mrf.mxu0
      %v304 = vadd.f32 0.0, %v303
      %305 = vdwg.mxu0
      %v306 = vld [vmem:[%s2 + $0x8] sm:$0xff]
      %v307 = vld [vmem:[%s2 + $0x10] sm:$0xff]
      %v309 = vsel %vm262, %v306, 0
      %v312 = vsel %vm262, %v307, 0
      %314 = vmatpush.msra.mxu0 0.0
      %315 = vmatpush.msra.mxu0 0.0
      %316 = vmatpush.msra.mxu0 0.0
      %317 = vmatpush.msra.mxu0 0.0
      %318 = vmatpush.msra.mxu0 0.0
      %319 = vmatpush.msra.mxu0 0.0
      %320 = vmatpush.msra.mxu0 0.0
      %321 = vmatpush.msra.mxu0 0.0
      %322 = vmatpush.msra.mxu0 0.0
      %323 = vmatpush.msra.mxu0 0.0
      %324 = vmatpush.msra.mxu0 0.0
      %325 = vmatpush.msra.mxu0 0.0
      %326 = vmatpush.msra.mxu0 0.0
      %327 = vmatpush.msra.mxu0 0.0
      %328 = vmatpush.msra.mxu0 0.0
      %329 = vmatpush.msra.mxu0 %v257
      %330 = vmatmul.f32.gmra.mxu0 %v309
      %v331 = vpop.f32.mrf.mxu0
      %v332 = vadd.f32 0.0, %v331
      %333 = vmatmul.f32.gmra.mxu0 %v312
      %v334 = vpop.f32.mrf.mxu0
      %v335 = vadd.f32 0.0, %v334
      %336 = vdwg.mxu0
      %337 = vmatpush.msra.mxu0 0.0
      %338 = vmatpush.msra.mxu0 0.0
      %339 = vmatpush.msra.mxu0 0.0
      %340 = vmatpush.msra.mxu0 0.0
      %341 = vmatpush.msra.mxu0 0.0
      %342 = vmatpush.msra.mxu0 0.0
      %343 = vmatpush.msra.mxu0 0.0
      %344 = vmatpush.msra.mxu0 0.0
      %345 = vmatpush.msra.mxu0 0.0
      %346 = vmatpush.msra.mxu0 0.0
      %347 = vmatpush.msra.mxu0 0.0
      %348 = vmatpush.msra.mxu0 0.0
      %349 = vmatpush.msra.mxu0 0.0
      %350 = vmatpush.msra.mxu0 0.0
      %351 = vmatpush.msra.mxu0 0.0
      %352 = vmatpush.msra.mxu0 %v258
      %353 = vmatmul.f32.gmra.mxu0 %v309
      %v354 = vpop.f32.mrf.mxu0
      %v355 = vadd.f32 0.0, %v354
      %356 = vmatmul.f32.gmra.mxu0 %v312
      %v357 = vpop.f32.mrf.mxu0
      %v358 = vadd.f32 0.0, %v357
      %359 = vdwg.mxu0
      %360 = vxpose.xlu0.b32.start [1/16] %v284, 128
      %361 = vxpose.xlu0.b32.cont [2/16] 0.0, 128
      %362 = vxpose.xlu0.b32.cont [3/16] 0.0, 128
      %363 = vxpose.xlu0.b32.cont [4/16] 0.0, 128
      %364 = vxpose.xlu0.b32.cont [5/16] 0.0, 128
      %365 = vxpose.xlu0.b32.cont [6/16] 0.0, 128
      %366 = vxpose.xlu0.b32.cont [7/16] 0.0, 128
      %367 = vxpose.xlu0.b32.cont [8/16] 0.0, 128
      %368 = vxpose.xlu0.b32.cont [9/16] 0.0, 128
      %369 = vxpose.xlu0.b32.cont [10/16] 0.0, 128
      %370 = vxpose.xlu0.b32.cont [11/16] 0.0, 128
      %371 = vxpose.xlu0.b32.cont [12/16] 0.0, 128
      %372 = vxpose.xlu0.b32.cont [13/16] 0.0, 128
      %373 = vxpose.xlu0.b32.cont [14/16] 0.0, 128
      %374 = vxpose.xlu0.b32.cont [15/16] 0.0, 128
      %375 = vxpose.xlu0.b32.end [16/16] 0.0, 128
      %v376 = vpop.trf.xlu0
      %v377 = vpop.trf.xlu0
      %v378 = vpop.trf.xlu0
      %v379 = vpop.trf.xlu0
      %v380 = vpop.trf.xlu0
      %v381 = vpop.trf.xlu0
      %v382 = vpop.trf.xlu0
      %v383 = vpop.trf.xlu0
      %v384 = vpop.trf.xlu0
      %v385 = vpop.trf.xlu0
      %v386 = vpop.trf.xlu0
      %v387 = vpop.trf.xlu0
      %v388 = vpop.trf.xlu0
      %v389 = vpop.trf.xlu0
      %v390 = vpop.trf.xlu0
      %v391 = vpop.trf.xlu0
      %392 = vxpose.xlu0.b32.start [1/16] %v304, 128
      %393 = vxpose.xlu0.b32.cont [2/16] 0.0, 128
      %394 = vxpose.xlu0.b32.cont [3/16] 0.0, 128
      %395 = vxpose.xlu0.b32.cont [4/16] 0.0, 128
      %396 = vxpose.xlu0.b32.cont [5/16] 0.0, 128
      %397 = vxpose.xlu0.b32.cont [6/16] 0.0, 128
      %398 = vxpose.xlu0.b32.cont [7/16] 0.0, 128
      %399 = vxpose.xlu0.b32.cont [8/16] 0.0, 128
      %400 = vxpose.xlu0.b32.cont [9/16] 0.0, 128
      %401 = vxpose.xlu0.b32.cont [10/16] 0.0, 128
      %402 = vxpose.xlu0.b32.cont [11/16] 0.0, 128
      %403 = vxpose.xlu0.b32.cont [12/16] 0.0, 128
      %404 = vxpose.xlu0.b32.cont [13/16] 0.0, 128
      %405 = vxpose.xlu0.b32.cont [14/16] 0.0, 128
      %406 = vxpose.xlu0.b32.cont [15/16] 0.0, 128
      %407 = vxpose.xlu0.b32.end [16/16] 0.0, 128
      %v408 = vpop.trf.xlu0
      %v409 = vpop.trf.xlu0
      %v410 = vpop.trf.xlu0
      %v411 = vpop.trf.xlu0
      %v412 = vpop.trf.xlu0
      %v413 = vpop.trf.xlu0
      %v414 = vpop.trf.xlu0
      %v415 = vpop.trf.xlu0
      %v416 = vpop.trf.xlu0
      %v417 = vpop.trf.xlu0
      %v418 = vpop.trf.xlu0
      %v419 = vpop.trf.xlu0
      %v420 = vpop.trf.xlu0
      %v421 = vpop.trf.xlu0
      %v422 = vpop.trf.xlu0
      %v423 = vpop.trf.xlu0
      %v425 = vsel %vm262, %v376, 0
      %v428 = vsel %vm262, %v377, 0
      %v431 = vsel %vm262, %v378, 0
      %v434 = vsel %vm262, %v379, 0
      %v437 = vsel %vm262, %v380, 0
      %v440 = vsel %vm262, %v381, 0
      %v443 = vsel %vm262, %v382, 0
      %v446 = vsel %vm262, %v383, 0
      %v449 = vsel %vm262, %v384, 0
      %v452 = vsel %vm262, %v385, 0
      %v455 = vsel %vm262, %v386, 0
      %v458 = vsel %vm262, %v387, 0
      %v461 = vsel %vm262, %v388, 0
      %v464 = vsel %vm262, %v389, 0
      %v467 = vsel %vm262, %v390, 0
      %v470 = vsel %vm262, %v391, 0
      %v473 = vsel %vm262, %v408, 0
      %v476 = vsel %vm262, %v409, 0
      %v479 = vsel %vm262, %v410, 0
      %v482 = vsel %vm262, %v411, 0
      %v485 = vsel %vm262, %v412, 0
      %v488 = vsel %vm262, %v413, 0
      %v491 = vsel %vm262, %v414, 0
      %v494 = vsel %vm262, %v415, 0
      %v497 = vsel %vm262, %v416, 0
      %v500 = vsel %vm262, %v417, 0
      %v503 = vsel %vm262, %v418, 0
      %v506 = vsel %vm262, %v419, 0
      %v509 = vsel %vm262, %v420, 0
      %v512 = vsel %vm262, %v421, 0
      %v515 = vsel %vm262, %v422, 0
      %v518 = vsel %vm262, %v423, 0
      %520 = vmatpush.msra.mxu0 0.0
      %521 = vmatpush.msra.mxu0 0.0
      %522 = vmatpush.msra.mxu0 0.0
      %523 = vmatpush.msra.mxu0 0.0
      %524 = vmatpush.msra.mxu0 0.0
      %525 = vmatpush.msra.mxu0 0.0
      %526 = vmatpush.msra.mxu0 0.0
      %527 = vmatpush.msra.mxu0 0.0
      %528 = vmatpush.msra.mxu0 0.0
      %529 = vmatpush.msra.mxu0 0.0
      %530 = vmatpush.msra.mxu0 0.0
      %531 = vmatpush.msra.mxu0 0.0
      %532 = vmatpush.msra.mxu0 0.0
      %533 = vmatpush.msra.mxu0 0.0
      %534 = vmatpush.msra.mxu0 0.0
      %535 = vmatpush.msra.mxu0 %v332
      %536 = vmatmul.f32.gmra.mxu0 %v425
      %v537 = vpop.f32.mrf.mxu0
      %v538 = vadd.f32 0.0, %v537
      %539 = vmatmul.f32.gmra.mxu0 %v428
      %v540 = vpop.f32.mrf.mxu0
      %v541 = vadd.f32 0.0, %v540
      %542 = vmatmul.f32.gmra.mxu0 %v431
      %v543 = vpop.f32.mrf.mxu0
      %v544 = vadd.f32 0.0, %v543
      %545 = vmatmul.f32.gmra.mxu0 %v434
      %v546 = vpop.f32.mrf.mxu0
      %v547 = vadd.f32 0.0, %v546
      %548 = vmatmul.f32.gmra.mxu0 %v437
      %v549 = vpop.f32.mrf.mxu0
      %v550 = vadd.f32 0.0, %v549
      %551 = vmatmul.f32.gmra.mxu0 %v440
      %v552 = vpop.f32.mrf.mxu0
      %v553 = vadd.f32 0.0, %v552
      %554 = vmatmul.f32.gmra.mxu0 %v443
      %v555 = vpop.f32.mrf.mxu0
      %v556 = vadd.f32 0.0, %v555
      %557 = vmatmul.f32.gmra.mxu0 %v446
      %v558 = vpop.f32.mrf.mxu0
      %v559 = vadd.f32 0.0, %v558
      %560 = vmatmul.f32.gmra.mxu0 %v449
      %v561 = vpop.f32.mrf.mxu0
      %v562 = vadd.f32 0.0, %v561
      %563 = vmatmul.f32.gmra.mxu0 %v452
      %v564 = vpop.f32.mrf.mxu0
      %v565 = vadd.f32 0.0, %v564
      %566 = vmatmul.f32.gmra.mxu0 %v455
      %v567 = vpop.f32.mrf.mxu0
      %v568 = vadd.f32 0.0, %v567
      %569 = vmatmul.f32.gmra.mxu0 %v458
      %v570 = vpop.f32.mrf.mxu0
      %v571 = vadd.f32 0.0, %v570
      %572 = vmatmul.f32.gmra.mxu0 %v461
      %v573 = vpop.f32.mrf.mxu0
      %v574 = vadd.f32 0.0, %v573
      %575 = vmatmul.f32.gmra.mxu0 %v464
      %v576 = vpop.f32.mrf.mxu0
      %v577 = vadd.f32 0.0, %v576
      %578 = vmatmul.f32.gmra.mxu0 %v467
      %v579 = vpop.f32.mrf.mxu0
      %v580 = vadd.f32 0.0, %v579
      %581 = vmatmul.f32.gmra.mxu0 %v470
      %v582 = vpop.f32.mrf.mxu0
      %v583 = vadd.f32 0.0, %v582
      %584 = vmatmul.f32.gmra.mxu0 %v473
      %v585 = vpop.f32.mrf.mxu0
      %v586 = vadd.f32 0.0, %v585
      %587 = vmatmul.f32.gmra.mxu0 %v476
      %v588 = vpop.f32.mrf.mxu0
      %v589 = vadd.f32 0.0, %v588
      %590 = vmatmul.f32.gmra.mxu0 %v479
      %v591 = vpop.f32.mrf.mxu0
      %v592 = vadd.f32 0.0, %v591
      %593 = vmatmul.f32.gmra.mxu0 %v482
      %v594 = vpop.f32.mrf.mxu0
      %v595 = vadd.f32 0.0, %v594
      %596 = vmatmul.f32.gmra.mxu0 %v485
      %v597 = vpop.f32.mrf.mxu0
      %v598 = vadd.f32 0.0, %v597
      %599 = vmatmul.f32.gmra.mxu0 %v488
      %v600 = vpop.f32.mrf.mxu0
      %v601 = vadd.f32 0.0, %v600
      %602 = vmatmul.f32.gmra.mxu0 %v491
      %v603 = vpop.f32.mrf.mxu0
      %v604 = vadd.f32 0.0, %v603
      %605 = vmatmul.f32.gmra.mxu0 %v494
      %v606 = vpop.f32.mrf.mxu0
      %v607 = vadd.f32 0.0, %v606
      %608 = vmatmul.f32.gmra.mxu0 %v497
      %v609 = vpop.f32.mrf.mxu0
      %v610 = vadd.f32 0.0, %v609
      %611 = vmatmul.f32.gmra.mxu0 %v500
      %v612 = vpop.f32.mrf.mxu0
      %v613 = vadd.f32 0.0, %v612
      %614 = vmatmul.f32.gmra.mxu0 %v503
      %v615 = vpop.f32.mrf.mxu0
      %v616 = vadd.f32 0.0, %v615
      %617 = vmatmul.f32.gmra.mxu0 %v506
      %v618 = vpop.f32.mrf.mxu0
      %v619 = vadd.f32 0.0, %v618
      %620 = vmatmul.f32.gmra.mxu0 %v509
      %v621 = vpop.f32.mrf.mxu0
      %v622 = vadd.f32 0.0, %v621
      %623 = vmatmul.f32.gmra.mxu0 %v512
      %v624 = vpop.f32.mrf.mxu0
      %v625 = vadd.f32 0.0, %v624
      %626 = vmatmul.f32.gmra.mxu0 %v515
      %v627 = vpop.f32.mrf.mxu0
      %v628 = vadd.f32 0.0, %v627
      %629 = vmatmul.f32.gmra.mxu0 %v518
      %v630 = vpop.f32.mrf.mxu0
      %v631 = vadd.f32 0.0, %v630
      %632 = vdwg.mxu0
      %633 = vmatpush.msra.mxu0 0.0
      %634 = vmatpush.msra.mxu0 0.0
      %635 = vmatpush.msra.mxu0 0.0
      %636 = vmatpush.msra.mxu0 0.0
      %637 = vmatpush.msra.mxu0 0.0
      %638 = vmatpush.msra.mxu0 0.0
      %639 = vmatpush.msra.mxu0 0.0
      %640 = vmatpush.msra.mxu0 0.0
      %641 = vmatpush.msra.mxu0 0.0
      %642 = vmatpush.msra.mxu0 0.0
      %643 = vmatpush.msra.mxu0 0.0
      %644 = vmatpush.msra.mxu0 0.0
      %645 = vmatpush.msra.mxu0 0.0
      %646 = vmatpush.msra.mxu0 0.0
      %647 = vmatpush.msra.mxu0 0.0
      %648 = vmatpush.msra.mxu0 %v355
      %649 = vmatmul.f32.gmra.mxu0 %v425
      %v650 = vpop.f32.mrf.mxu0
      %v651 = vadd.f32 0.0, %v650
      %652 = vmatmul.f32.gmra.mxu0 %v428
      %v653 = vpop.f32.mrf.mxu0
      %v654 = vadd.f32 0.0, %v653
      %655 = vmatmul.f32.gmra.mxu0 %v431
      %v656 = vpop.f32.mrf.mxu0
      %v657 = vadd.f32 0.0, %v656
      %658 = vmatmul.f32.gmra.mxu0 %v434
      %v659 = vpop.f32.mrf.mxu0
      %v660 = vadd.f32 0.0, %v659
      %661 = vmatmul.f32.gmra.mxu0 %v437
      %v662 = vpop.f32.mrf.mxu0
      %v663 = vadd.f32 0.0, %v662
      %664 = vmatmul.f32.gmra.mxu0 %v440
      %v665 = vpop.f32.mrf.mxu0
      %v666 = vadd.f32 0.0, %v665
      %667 = vmatmul.f32.gmra.mxu0 %v443
      %v668 = vpop.f32.mrf.mxu0
      %v669 = vadd.f32 0.0, %v668
      %670 = vmatmul.f32.gmra.mxu0 %v446
      %v671 = vpop.f32.mrf.mxu0
      %v672 = vadd.f32 0.0, %v671
      %673 = vmatmul.f32.gmra.mxu0 %v449
      %v674 = vpop.f32.mrf.mxu0
      %v675 = vadd.f32 0.0, %v674
      %676 = vmatmul.f32.gmra.mxu0 %v452
      %v677 = vpop.f32.mrf.mxu0
      %v678 = vadd.f32 0.0, %v677
      %679 = vmatmul.f32.gmra.mxu0 %v455
      %v680 = vpop.f32.mrf.mxu0
      %v681 = vadd.f32 0.0, %v680
      %682 = vmatmul.f32.gmra.mxu0 %v458
      %v683 = vpop.f32.mrf.mxu0
      %v684 = vadd.f32 0.0, %v683
      %685 = vmatmul.f32.gmra.mxu0 %v461
      %v686 = vpop.f32.mrf.mxu0
      %v687 = vadd.f32 0.0, %v686
      %688 = vmatmul.f32.gmra.mxu0 %v464
      %v689 = vpop.f32.mrf.mxu0
      %v690 = vadd.f32 0.0, %v689
      %691 = vmatmul.f32.gmra.mxu0 %v467
      %v692 = vpop.f32.mrf.mxu0
      %v693 = vadd.f32 0.0, %v692
      %694 = vmatmul.f32.gmra.mxu0 %v470
      %v695 = vpop.f32.mrf.mxu0
      %v696 = vadd.f32 0.0, %v695
      %697 = vmatmul.f32.gmra.mxu0 %v473
      %v698 = vpop.f32.mrf.mxu0
      %v699 = vadd.f32 0.0, %v698
      %700 = vmatmul.f32.gmra.mxu0 %v476
      %v701 = vpop.f32.mrf.mxu0
      %v702 = vadd.f32 0.0, %v701
      %703 = vmatmul.f32.gmra.mxu0 %v479
      %v704 = vpop.f32.mrf.mxu0
      %v705 = vadd.f32 0.0, %v704
      %706 = vmatmul.f32.gmra.mxu0 %v482
      %v707 = vpop.f32.mrf.mxu0
      %v708 = vadd.f32 0.0, %v707
      %709 = vmatmul.f32.gmra.mxu0 %v485
      %v710 = vpop.f32.mrf.mxu0
      %v711 = vadd.f32 0.0, %v710
      %712 = vmatmul.f32.gmra.mxu0 %v488
      %v713 = vpop.f32.mrf.mxu0
      %v714 = vadd.f32 0.0, %v713
      %715 = vmatmul.f32.gmra.mxu0 %v491
      %v716 = vpop.f32.mrf.mxu0
      %v717 = vadd.f32 0.0, %v716
      %718 = vmatmul.f32.gmra.mxu0 %v494
      %v719 = vpop.f32.mrf.mxu0
      %v720 = vadd.f32 0.0, %v719
      %721 = vmatmul.f32.gmra.mxu0 %v497
      %v722 = vpop.f32.mrf.mxu0
      %v723 = vadd.f32 0.0, %v722
      %724 = vmatmul.f32.gmra.mxu0 %v500
      %v725 = vpop.f32.mrf.mxu0
      %v726 = vadd.f32 0.0, %v725
      %727 = vmatmul.f32.gmra.mxu0 %v503
      %v728 = vpop.f32.mrf.mxu0
      %v729 = vadd.f32 0.0, %v728
      %730 = vmatmul.f32.gmra.mxu0 %v506
      %v731 = vpop.f32.mrf.mxu0
      %v732 = vadd.f32 0.0, %v731
      %733 = vmatmul.f32.gmra.mxu0 %v509
      %v734 = vpop.f32.mrf.mxu0
      %v735 = vadd.f32 0.0, %v734
      %736 = vmatmul.f32.gmra.mxu0 %v512
      %v737 = vpop.f32.mrf.mxu0
      %v738 = vadd.f32 0.0, %v737
      %739 = vmatmul.f32.gmra.mxu0 %v515
      %v740 = vpop.f32.mrf.mxu0
      %v741 = vadd.f32 0.0, %v740
      %742 = vmatmul.f32.gmra.mxu0 %v518
      %v743 = vpop.f32.mrf.mxu0
      %v744 = vadd.f32 0.0, %v743
      %745 = vdwg.mxu0
      %v746 = vmax.f32 %v538, %v651
      %747 = vmax.xlane.f32.xlu0 %v746
      %v748 = vpop.xlane.xlu0 %747
      %v749 = vmax.f32 %v541, %v654
      %750 = vmax.xlane.f32.xlu0 %v749
      %v751 = vpop.xlane.xlu0 %750
      %v752 = vmax.f32 %v544, %v657
      %753 = vmax.xlane.f32.xlu0 %v752
      %v754 = vpop.xlane.xlu0 %753
      %v755 = vmax.f32 %v547, %v660
      %756 = vmax.xlane.f32.xlu0 %v755
      %v757 = vpop.xlane.xlu0 %756
      %v758 = vmax.f32 %v550, %v663
      %759 = vmax.xlane.f32.xlu0 %v758
      %v760 = vpop.xlane.xlu0 %759
      %v761 = vmax.f32 %v553, %v666
      %762 = vmax.xlane.f32.xlu0 %v761
      %v763 = vpop.xlane.xlu0 %762
      %v764 = vmax.f32 %v556, %v669
      %765 = vmax.xlane.f32.xlu0 %v764
      %v766 = vpop.xlane.xlu0 %765
      %v767 = vmax.f32 %v559, %v672
      %768 = vmax.xlane.f32.xlu0 %v767
      %v769 = vpop.xlane.xlu0 %768
      %v770 = vmax.f32 %v562, %v675
      %771 = vmax.xlane.f32.xlu0 %v770
      %v772 = vpop.xlane.xlu0 %771
      %v773 = vmax.f32 %v565, %v678
      %774 = vmax.xlane.f32.xlu0 %v773
      %v775 = vpop.xlane.xlu0 %774
      %v776 = vmax.f32 %v568, %v681
      %777 = vmax.xlane.f32.xlu0 %v776
      %v778 = vpop.xlane.xlu0 %777
      %v779 = vmax.f32 %v571, %v684
      %780 = vmax.xlane.f32.xlu0 %v779
      %v781 = vpop.xlane.xlu0 %780
      %v782 = vmax.f32 %v574, %v687
      %783 = vmax.xlane.f32.xlu0 %v782
      %v784 = vpop.xlane.xlu0 %783
      %v785 = vmax.f32 %v577, %v690
      %786 = vmax.xlane.f32.xlu0 %v785
      %v787 = vpop.xlane.xlu0 %786
      %v788 = vmax.f32 %v580, %v693
      %789 = vmax.xlane.f32.xlu0 %v788
      %v790 = vpop.xlane.xlu0 %789
      %v791 = vmax.f32 %v583, %v696
      %792 = vmax.xlane.f32.xlu0 %v791
      %v793 = vpop.xlane.xlu0 %792
      %v794 = vmax.f32 %v586, %v699
      %795 = vmax.xlane.f32.xlu0 %v794
      %v796 = vpop.xlane.xlu0 %795
      %v797 = vmax.f32 %v589, %v702
      %798 = vmax.xlane.f32.xlu0 %v797
      %v799 = vpop.xlane.xlu0 %798
      %v800 = vmax.f32 %v592, %v705
      %801 = vmax.xlane.f32.xlu0 %v800
      %v802 = vpop.xlane.xlu0 %801
      %v803 = vmax.f32 %v595, %v708
      %804 = vmax.xlane.f32.xlu0 %v803
      %v805 = vpop.xlane.xlu0 %804
      %v806 = vmax.f32 %v598, %v711
      %807 = vmax.xlane.f32.xlu0 %v806
      %v808 = vpop.xlane.xlu0 %807
      %v809 = vmax.f32 %v601, %v714
      %810 = vmax.xlane.f32.xlu0 %v809
      %v811 = vpop.xlane.xlu0 %810
      %v812 = vmax.f32 %v604, %v717
      %813 = vmax.xlane.f32.xlu0 %v812
      %v814 = vpop.xlane.xlu0 %813
      %v815 = vmax.f32 %v607, %v720
      %816 = vmax.xlane.f32.xlu0 %v815
      %v817 = vpop.xlane.xlu0 %816
      %v818 = vmax.f32 %v610, %v723
      %819 = vmax.xlane.f32.xlu0 %v818
      %v820 = vpop.xlane.xlu0 %819
      %v821 = vmax.f32 %v613, %v726
      %822 = vmax.xlane.f32.xlu0 %v821
      %v823 = vpop.xlane.xlu0 %822
      %v824 = vmax.f32 %v616, %v729
      %825 = vmax.xlane.f32.xlu0 %v824
      %v826 = vpop.xlane.xlu0 %825
      %v827 = vmax.f32 %v619, %v732
      %828 = vmax.xlane.f32.xlu0 %v827
      %v829 = vpop.xlane.xlu0 %828
      %v830 = vmax.f32 %v622, %v735
      %831 = vmax.xlane.f32.xlu0 %v830
      %v832 = vpop.xlane.xlu0 %831
      %v833 = vmax.f32 %v625, %v738
      %834 = vmax.xlane.f32.xlu0 %v833
      %v835 = vpop.xlane.xlu0 %834
      %v836 = vmax.f32 %v628, %v741
      %837 = vmax.xlane.f32.xlu0 %v836
      %v838 = vpop.xlane.xlu0 %837
      %v839 = vmax.f32 %v631, %v744
      %840 = vmax.xlane.f32.xlu0 %v839
      %v841 = vpop.xlane.xlu0 %840
      %v842 = vsub.f32 %v538, %v748
      %v843 = vsub.f32 %v651, %v748
      %v844 = vsub.f32 %v541, %v751
      %v845 = vsub.f32 %v654, %v751
      %v846 = vsub.f32 %v544, %v754
      %v847 = vsub.f32 %v657, %v754
      %v848 = vsub.f32 %v547, %v757
      %v849 = vsub.f32 %v660, %v757
      %v850 = vsub.f32 %v550, %v760
      %v851 = vsub.f32 %v663, %v760
      %v852 = vsub.f32 %v553, %v763
      %v853 = vsub.f32 %v666, %v763
      %v854 = vsub.f32 %v556, %v766
      %v855 = vsub.f32 %v669, %v766
      %v856 = vsub.f32 %v559, %v769
      %v857 = vsub.f32 %v672, %v769
      %v858 = vsub.f32 %v562, %v772
      %v859 = vsub.f32 %v675, %v772
      %v860 = vsub.f32 %v565, %v775
      %v861 = vsub.f32 %v678, %v775
      %v862 = vsub.f32 %v568, %v778
      %v863 = vsub.f32 %v681, %v778
      %v864 = vsub.f32 %v571, %v781
      %v865 = vsub.f32 %v684, %v781
      %v866 = vsub.f32 %v574, %v784
      %v867 = vsub.f32 %v687, %v784
      %v868 = vsub.f32 %v577, %v787
      %v869 = vsub.f32 %v690, %v787
      %v870 = vsub.f32 %v580, %v790
      %v871 = vsub.f32 %v693, %v790
      %v872 = vsub.f32 %v583, %v793
      %v873 = vsub.f32 %v696, %v793
      %v874 = vsub.f32 %v586, %v796
      %v875 = vsub.f32 %v699, %v796
      %v876 = vsub.f32 %v589, %v799
      %v877 = vsub.f32 %v702, %v799
      %v878 = vsub.f32 %v592, %v802
      %v879 = vsub.f32 %v705, %v802
      %v880 = vsub.f32 %v595, %v805
      %v881 = vsub.f32 %v708, %v805
      %v882 = vsub.f32 %v598, %v808
      %v883 = vsub.f32 %v711, %v808
      %v884 = vsub.f32 %v601, %v811
      %v885 = vsub.f32 %v714, %v811
      %v886 = vsub.f32 %v604, %v814
      %v887 = vsub.f32 %v717, %v814
      %v888 = vsub.f32 %v607, %v817
      %v889 = vsub.f32 %v720, %v817
      %v890 = vsub.f32 %v610, %v820
      %v891 = vsub.f32 %v723, %v820
      %v892 = vsub.f32 %v613, %v823
      %v893 = vsub.f32 %v726, %v823
      %v894 = vsub.f32 %v616, %v826
      %v895 = vsub.f32 %v729, %v826
      %v896 = vsub.f32 %v619, %v829
      %v897 = vsub.f32 %v732, %v829
      %v898 = vsub.f32 %v622, %v832
      %v899 = vsub.f32 %v735, %v832
      %v900 = vsub.f32 %v625, %v835
      %v901 = vsub.f32 %v738, %v835
      %v902 = vsub.f32 %v628, %v838
      %v903 = vsub.f32 %v741, %v838
      %v904 = vsub.f32 %v631, %v841
      %v905 = vsub.f32 %v744, %v841
      %v906 = vmul.f32 %v842, 1.442695
      %v907 = vpow.pop %v906
      %v908 = vmul.f32 %v843, 1.442695
      %v909 = vpow.pop %v908
      %v910 = vmul.f32 %v844, 1.442695
      %v911 = vpow.pop %v910
      %v912 = vmul.f32 %v845, 1.442695
      %v913 = vpow.pop %v912
      %v914 = vmul.f32 %v846, 1.442695
      %v915 = vpow.pop %v914
      %v916 = vmul.f32 %v847, 1.442695
      %v917 = vpow.pop %v916
      %v918 = vmul.f32 %v848, 1.442695
      %v919 = vpow.pop %v918
      %v920 = vmul.f32 %v849, 1.442695
      %v921 = vpow.pop %v920
      %v922 = vmul.f32 %v850, 1.442695
      %v923 = vpow.pop %v922
      %v924 = vmul.f32 %v851, 1.442695
      %v925 = vpow.pop %v924
      %v926 = vmul.f32 %v852, 1.442695
      %v927 = vpow.pop %v926
      %v928 = vmul.f32 %v853, 1.442695
      %v929 = vpow.pop %v928
      %v930 = vmul.f32 %v854, 1.442695
      %v931 = vpow.pop %v930
      %v932 = vmul.f32 %v855, 1.442695
      %v933 = vpow.pop %v932
      %v934 = vmul.f32 %v856, 1.442695
      %v935 = vpow.pop %v934
      %v936 = vmul.f32 %v857, 1.442695
      %v937 = vpow.pop %v936
      %v938 = vmul.f32 %v858, 1.442695
      %v939 = vpow.pop %v938
      %v940 = vmul.f32 %v859, 1.442695
      %v941 = vpow.pop %v940
      %v942 = vmul.f32 %v860, 1.442695
      %v943 = vpow.pop %v942
      %v944 = vmul.f32 %v861, 1.442695
      %v945 = vpow.pop %v944
      %v946 = vmul.f32 %v862, 1.442695
      %v947 = vpow.pop %v946
      %v948 = vmul.f32 %v863, 1.442695
      %v949 = vpow.pop %v948
      %v950 = vmul.f32 %v864, 1.442695
      %v951 = vpow.pop %v950
      %v952 = vmul.f32 %v865, 1.442695
      %v953 = vpow.pop %v952
      %v954 = vmul.f32 %v866, 1.442695
      %v955 = vpow.pop %v954
      %v956 = vmul.f32 %v867, 1.442695
      %v957 = vpow.pop %v956
      %v958 = vmul.f32 %v868, 1.442695
      %v959 = vpow.pop %v958
      %v960 = vmul.f32 %v869, 1.442695
      %v961 = vpow.pop %v960
      %v962 = vmul.f32 %v870, 1.442695
      %v963 = vpow.pop %v962
      %v964 = vmul.f32 %v871, 1.442695
      %v965 = vpow.pop %v964
      %v966 = vmul.f32 %v872, 1.442695
      %v967 = vpow.pop %v966
      %v968 = vmul.f32 %v873, 1.442695
      %v969 = vpow.pop %v968
      %v970 = vmul.f32 %v874, 1.442695
      %v971 = vpow.pop %v970
      %v972 = vmul.f32 %v875, 1.442695
      %v973 = vpow.pop %v972
      %v974 = vmul.f32 %v876, 1.442695
      %v975 = vpow.pop %v974
      %v976 = vmul.f32 %v877, 1.442695
      %v977 = vpow.pop %v976
      %v978 = vmul.f32 %v878, 1.442695
      %v979 = vpow.pop %v978
      %v980 = vmul.f32 %v879, 1.442695
      %v981 = vpow.pop %v980
      %v982 = vmul.f32 %v880, 1.442695
      %v983 = vpow.pop %v982
      %v984 = vmul.f32 %v881, 1.442695
      %v985 = vpow.pop %v984
      %v986 = vmul.f32 %v882, 1.442695
      %v987 = vpow.pop %v986
      %v988 = vmul.f32 %v883, 1.442695
      %v989 = vpow.pop %v988
      %v990 = vmul.f32 %v884, 1.442695
      %v991 = vpow.pop %v990
      %v992 = vmul.f32 %v885, 1.442695
      %v993 = vpow.pop %v992
      %v994 = vmul.f32 %v886, 1.442695
      %v995 = vpow.pop %v994
      %v996 = vmul.f32 %v887, 1.442695
      %v997 = vpow.pop %v996
      %v998 = vmul.f32 %v888, 1.442695
      %v999 = vpow.pop %v998
      %v1000 = vmul.f32 %v889, 1.442695
      %v1001 = vpow.pop %v1000
      %v1002 = vmul.f32 %v890, 1.442695
      %v1003 = vpow.pop %v1002
      %v1004 = vmul.f32 %v891, 1.442695
      %v1005 = vpow.pop %v1004
      %v1006 = vmul.f32 %v892, 1.442695
      %v1007 = vpow.pop %v1006
      %v1008 = vmul.f32 %v893, 1.442695
      %v1009 = vpow.pop %v1008
      %v1010 = vmul.f32 %v894, 1.442695
      %v1011 = vpow.pop %v1010
      %v1012 = vmul.f32 %v895, 1.442695
      %v1013 = vpow.pop %v1012
      %v1014 = vmul.f32 %v896, 1.442695
      %v1015 = vpow.pop %v1014
      %v1016 = vmul.f32 %v897, 1.442695
      %v1017 = vpow.pop %v1016
      %v1018 = vmul.f32 %v898, 1.442695
      %v1019 = vpow.pop %v1018
      %v1020 = vmul.f32 %v899, 1.442695
      %v1021 = vpow.pop %v1020
      %v1022 = vmul.f32 %v900, 1.442695
      %v1023 = vpow.pop %v1022
      %v1024 = vmul.f32 %v901, 1.442695
      %v1025 = vpow.pop %v1024
      %v1026 = vmul.f32 %v902, 1.442695
      %v1027 = vpow.pop %v1026
      %v1028 = vmul.f32 %v903, 1.442695
      %v1029 = vpow.pop %v1028
      %v1030 = vmul.f32 %v904, 1.442695
      %v1031 = vpow.pop %v1030
      %v1032 = vmul.f32 %v905, 1.442695
      %v1033 = vpow.pop %v1032
      %1034 = vmatpush.xpose.msra.mxu0 %v967
      %1035 = vmatpush.xpose.msra.mxu0 %v963
      %1036 = vmatpush.xpose.msra.mxu0 %v959
      %1037 = vmatpush.xpose.msra.mxu0 %v955
      %1038 = vmatpush.xpose.msra.mxu0 %v951
      %1039 = vmatpush.xpose.msra.mxu0 %v947
      %1040 = vmatpush.xpose.msra.mxu0 %v943
      %1041 = vmatpush.xpose.msra.mxu0 %v939
      %1042 = vmatpush.xpose.msra.mxu0 %v935
      %1043 = vmatpush.xpose.msra.mxu0 %v931
      %1044 = vmatpush.xpose.msra.mxu0 %v927
      %1045 = vmatpush.xpose.msra.mxu0 %v923
      %1046 = vmatpush.xpose.msra.mxu0 %v919
      %1047 = vmatpush.xpose.msra.mxu0 %v915
      %1048 = vmatpush.xpose.msra.mxu0 %v911
      %1049 = vmatpush.xpose.msra.mxu0 %v907
      %1050 = vmatmul.f32.gmra.mxu0 %v335
      %v1051 = vpop.f32.mrf.mxu0
      %v1052 = vadd.f32 0.0, %v1051
      %1053 = vdwg.mxu0
      %1054 = vmatpush.xpose.msra.mxu0 %v969
      %1055 = vmatpush.xpose.msra.mxu0 %v965
      %1056 = vmatpush.xpose.msra.mxu0 %v961
      %1057 = vmatpush.xpose.msra.mxu0 %v957
      %1058 = vmatpush.xpose.msra.mxu0 %v953
      %1059 = vmatpush.xpose.msra.mxu0 %v949
      %1060 = vmatpush.xpose.msra.mxu0 %v945
      %1061 = vmatpush.xpose.msra.mxu0 %v941
      %1062 = vmatpush.xpose.msra.mxu0 %v937
      %1063 = vmatpush.xpose.msra.mxu0 %v933
      %1064 = vmatpush.xpose.msra.mxu0 %v929
      %1065 = vmatpush.xpose.msra.mxu0 %v925
      %1066 = vmatpush.xpose.msra.mxu0 %v921
      %1067 = vmatpush.xpose.msra.mxu0 %v917
      %1068 = vmatpush.xpose.msra.mxu0 %v913
      %1069 = vmatpush.xpose.msra.mxu0 %v909
      %1070 = vmatmul.f32.gmra.mxu0 %v358
      %v1071 = vpop.f32.mrf.mxu0
      %v1072 = vadd.f32 %v1052, %v1071
      %1073 = vdwg.mxu0
      %1074 = vmatpush.xpose.msra.mxu0 %v1031
      %1075 = vmatpush.xpose.msra.mxu0 %v1027
      %1076 = vmatpush.xpose.msra.mxu0 %v1023
      %1077 = vmatpush.xpose.msra.mxu0 %v1019
      %1078 = vmatpush.xpose.msra.mxu0 %v1015
      %1079 = vmatpush.xpose.msra.mxu0 %v1011
      %1080 = vmatpush.xpose.msra.mxu0 %v1007
      %1081 = vmatpush.xpose.msra.mxu0 %v1003
      %1082 = vmatpush.xpose.msra.mxu0 %v999
      %1083 = vmatpush.xpose.msra.mxu0 %v995
      %1084 = vmatpush.xpose.msra.mxu0 %v991
      %1085 = vmatpush.xpose.msra.mxu0 %v987
      %1086 = vmatpush.xpose.msra.mxu0 %v983
      %1087 = vmatpush.xpose.msra.mxu0 %v979
      %1088 = vmatpush.xpose.msra.mxu0 %v975
      %1089 = vmatpush.xpose.msra.mxu0 %v971
      %1090 = vmatmul.f32.gmra.mxu0 %v335
      %v1091 = vpop.f32.mrf.mxu0
      %v1092 = vadd.f32 0.0, %v1091
      %1093 = vdwg.mxu0
      %1094 = vmatpush.xpose.msra.mxu0 %v1033
      %1095 = vmatpush.xpose.msra.mxu0 %v1029
      %1096 = vmatpush.xpose.msra.mxu0 %v1025
      %1097 = vmatpush.xpose.msra.mxu0 %v1021
      %1098 = vmatpush.xpose.msra.mxu0 %v1017
      %1099 = vmatpush.xpose.msra.mxu0 %v1013
      %1100 = vmatpush.xpose.msra.mxu0 %v1009
      %1101 = vmatpush.xpose.msra.mxu0 %v1005
      %1102 = vmatpush.xpose.msra.mxu0 %v1001
      %1103 = vmatpush.xpose.msra.mxu0 %v997
      %1104 = vmatpush.xpose.msra.mxu0 %v993
      %1105 = vmatpush.xpose.msra.mxu0 %v989
      %1106 = vmatpush.xpose.msra.mxu0 %v985
      %1107 = vmatpush.xpose.msra.mxu0 %v981
      %1108 = vmatpush.xpose.msra.mxu0 %v977
      %1109 = vmatpush.xpose.msra.mxu0 %v973
      %1110 = vmatmul.f32.gmra.mxu0 %v358
      %v1111 = vpop.f32.mrf.mxu0
      %v1112 = vadd.f32 %v1092, %v1111
      %1113 = vdwg.mxu0
      %v1114 = vrcp.pop %v1072
      %v1115 = vrcp.pop %v1112
      %v1116 = vperm.slane %v1114, 4
      %v1117 = vperm.slane %v1115, 4
      %v1118 = vmul.f32 %v1072, %v1116
      %v1119 = vmul.f32 %v1112, %v1117
      %v1120 = vadd.f32 %v1118, %v259
      %v1121 = vadd.f32 %v1119, %v260
      %v1122 = vld [vmem:[%s3] sm:$0xff]
      %v1123 = vld [vmem:[%s3 + $0x8] sm:$0xff]
      %v1124 = vld [vmem:[%s3 + $0x10] sm:$0xff]
      %v1125 = vld [vmem:[%s3 + $0x18] sm:$0xff]
      %v1126 = vld [vmem:[%s3 + $0x20] sm:$0xff]
      %v1127 = vld [vmem:[%s3 + $0x28] sm:$0xff]
      %v1128 = vld [vmem:[%s3 + $0x30] sm:$0xff]
      %v1129 = vld [vmem:[%s3 + $0x38] sm:$0xff]
      %v1130 = vld [vmem:[%s3 + $0x40] sm:$0xff]
      %v1131 = vld [vmem:[%s3 + $0x48] sm:$0xff]
      %v1132 = vld [vmem:[%s3 + $0x50] sm:$0xff]
      %v1133 = vld [vmem:[%s3 + $0x58] sm:$0xff]
      %v1134 = vld [vmem:[%s3 + $0x60] sm:$0xff]
      %v1135 = vld [vmem:[%s3 + $0x68] sm:$0xff]
      %v1136 = vld [vmem:[%s3 + $0x70] sm:$0xff]
      %v1137 = vld [vmem:[%s3 + $0x78] sm:$0xff]
      %v1138 = vld [vmem:[%s3 + $0x80] sm:$0xff]
      %v1139 = vld [vmem:[%s3 + $0x88] sm:$0xff]
      %v1140 = vld [vmem:[%s3 + $0x90] sm:$0xff]
      %v1141 = vld [vmem:[%s3 + $0x98] sm:$0xff]
      %v1142 = vld [vmem:[%s3 + $0xa0] sm:$0xff]
      %v1143 = vld [vmem:[%s3 + $0xa8] sm:$0xff]
      %v1144 = vld [vmem:[%s3 + $0xb0] sm:$0xff]
      %v1145 = vld [vmem:[%s3 + $0xb8] sm:$0xff]
      %v1146 = vld [vmem:[%s3 + $0xc0] sm:$0xff]
      %v1147 = vld [vmem:[%s3 + $0xc8] sm:$0xff]
      %v1148 = vld [vmem:[%s3 + $0xd0] sm:$0xff]
      %v1149 = vld [vmem:[%s3 + $0xd8] sm:$0xff]
      %v1150 = vld [vmem:[%s3 + $0xe0] sm:$0xff]
      %v1151 = vld [vmem:[%s3 + $0xe8] sm:$0xff]
      %v1152 = vld [vmem:[%s3 + $0xf0] sm:$0xff]
      %v1153 = vld [vmem:[%s3 + $0xf8] sm:$0xff]
      %v1154 = vmax.f32 %v1120, %v1121
      %1155 = vmax.xlane.f32.xlu0 %v1154
      %v1156 = vpop.xlane.xlu0 %1155
      %v1157 = vsub.f32 %v1120, %v1156
      %v1158 = vsub.f32 %v1121, %v1156
      %v1159 = vmul.f32 %v1157, 1.442695
      %v1160 = vpow.pop %v1159
      %v1161 = vmul.f32 %v1158, 1.442695
      %v1162 = vpow.pop %v1161
      %1163 = vmatpush.msra.mxu0 %v1137
      %1164 = vmatpush.msra.mxu0 %v1136
      %1165 = vmatpush.msra.mxu0 %v1135
      %1166 = vmatpush.msra.mxu0 %v1134
      %1167 = vmatpush.msra.mxu0 %v1133
      %1168 = vmatpush.msra.mxu0 %v1132
      %1169 = vmatpush.msra.mxu0 %v1131
      %1170 = vmatpush.msra.mxu0 %v1130
      %1171 = vmatpush.msra.mxu0 %v1129
      %1172 = vmatpush.msra.mxu0 %v1128
      %1173 = vmatpush.msra.mxu0 %v1127
      %1174 = vmatpush.msra.mxu0 %v1126
      %1175 = vmatpush.msra.mxu0 %v1125
      %1176 = vmatpush.msra.mxu0 %v1124
      %1177 = vmatpush.msra.mxu0 %v1123
      %1178 = vmatpush.msra.mxu0 %v1122
      %1179 = vmatmul.f32.gmra.mxu0 %v1160
      %v1180 = vpop.f32.mrf.mxu0
      %v1181 = vadd.f32 0.0, %v1180
      %1182 = vdwg.mxu0
      %1183 = vmatpush.msra.mxu0 %v1153
      %1184 = vmatpush.msra.mxu0 %v1152
      %1185 = vmatpush.msra.mxu0 %v1151
      %1186 = vmatpush.msra.mxu0 %v1150
      %1187 = vmatpush.msra.mxu0 %v1149
      %1188 = vmatpush.msra.mxu0 %v1148
      %1189 = vmatpush.msra.mxu0 %v1147
      %1190 = vmatpush.msra.mxu0 %v1146
      %1191 = vmatpush.msra.mxu0 %v1145
      %1192 = vmatpush.msra.mxu0 %v1144
      %1193 = vmatpush.msra.mxu0 %v1143
      %1194 = vmatpush.msra.mxu0 %v1142
      %1195 = vmatpush.msra.mxu0 %v1141
      %1196 = vmatpush.msra.mxu0 %v1140
      %1197 = vmatpush.msra.mxu0 %v1139
      %1198 = vmatpush.msra.mxu0 %v1138
      %1199 = vmatmul.f32.gmra.mxu0 %v1162
      %v1200 = vpop.f32.mrf.mxu0
      %v1201 = vadd.f32 %v1181, %v1200
      %1202 = vdwg.mxu0
      %vm1203 = vcmask 130048
      %v1205 = vsel %vm1203, %v1201, 0
      %v1208 = vsel %vm1203, %v1122, 0
      %v1211 = vsel %vm1203, %v1123, 0
      %v1214 = vsel %vm1203, %v1124, 0
      %v1217 = vsel %vm1203, %v1125, 0
      %v1220 = vsel %vm1203, %v1126, 0
      %v1223 = vsel %vm1203, %v1127, 0
      %v1226 = vsel %vm1203, %v1128, 0
      %v1229 = vsel %vm1203, %v1129, 0
      %v1232 = vsel %vm1203, %v1130, 0
      %v1235 = vsel %vm1203, %v1131, 0
      %v1238 = vsel %vm1203, %v1132, 0
      %v1241 = vsel %vm1203, %v1133, 0
      %v1244 = vsel %vm1203, %v1134, 0
      %v1247 = vsel %vm1203, %v1135, 0
      %v1250 = vsel %vm1203, %v1136, 0
      %v1253 = vsel %vm1203, %v1137, 0
      %v1256 = vsel %vm1203, %v1138, 0
      %v1259 = vsel %vm1203, %v1139, 0
      %v1262 = vsel %vm1203, %v1140, 0
      %v1265 = vsel %vm1203, %v1141, 0
      %v1268 = vsel %vm1203, %v1142, 0
      %v1271 = vsel %vm1203, %v1143, 0
      %v1274 = vsel %vm1203, %v1144, 0
      %v1277 = vsel %vm1203, %v1145, 0
      %v1280 = vsel %vm1203, %v1146, 0
      %v1283 = vsel %vm1203, %v1147, 0
      %v1286 = vsel %vm1203, %v1148, 0
      %v1289 = vsel %vm1203, %v1149, 0
      %v1292 = vsel %vm1203, %v1150, 0
      %v1295 = vsel %vm1203, %v1151, 0
      %v1298 = vsel %vm1203, %v1152, 0
      %v1301 = vsel %vm1203, %v1153, 0
      %1303 = vmatpush.xpose.msra.mxu0 %v1253
      %1304 = vmatpush.xpose.msra.mxu0 %v1250
      %1305 = vmatpush.xpose.msra.mxu0 %v1247
      %1306 = vmatpush.xpose.msra.mxu0 %v1244
      %1307 = vmatpush.xpose.msra.mxu0 %v1241
      %1308 = vmatpush.xpose.msra.mxu0 %v1238
      %1309 = vmatpush.xpose.msra.mxu0 %v1235
      %1310 = vmatpush.xpose.msra.mxu0 %v1232
      %1311 = vmatpush.xpose.msra.mxu0 %v1229
      %1312 = vmatpush.xpose.msra.mxu0 %v1226
      %1313 = vmatpush.xpose.msra.mxu0 %v1223
      %1314 = vmatpush.xpose.msra.mxu0 %v1220
      %1315 = vmatpush.xpose.msra.mxu0 %v1217
      %1316 = vmatpush.xpose.msra.mxu0 %v1214
      %1317 = vmatpush.xpose.msra.mxu0 %v1211
      %1318 = vmatpush.xpose.msra.mxu0 %v1208
      %1319 = vmatmul.f32.gmra.mxu0 %v1205
      %v1320 = vpop.f32.mrf.mxu0
      %v1321 = vadd.f32 0.0, %v1320
      %1322 = vdwg.mxu0
      %1323 = vmatpush.xpose.msra.mxu0 %v1301
      %1324 = vmatpush.xpose.msra.mxu0 %v1298
      %1325 = vmatpush.xpose.msra.mxu0 %v1295
      %1326 = vmatpush.xpose.msra.mxu0 %v1292
      %1327 = vmatpush.xpose.msra.mxu0 %v1289
      %1328 = vmatpush.xpose.msra.mxu0 %v1286
      %1329 = vmatpush.xpose.msra.mxu0 %v1283
      %1330 = vmatpush.xpose.msra.mxu0 %v1280
      %1331 = vmatpush.xpose.msra.mxu0 %v1277
      %1332 = vmatpush.xpose.msra.mxu0 %v1274
      %1333 = vmatpush.xpose.msra.mxu0 %v1271
      %1334 = vmatpush.xpose.msra.mxu0 %v1268
      %1335 = vmatpush.xpose.msra.mxu0 %v1265
      %1336 = vmatpush.xpose.msra.mxu0 %v1262
      %1337 = vmatpush.xpose.msra.mxu0 %v1259
      %1338 = vmatpush.xpose.msra.mxu0 %v1256
      %1339 = vmatmul.f32.gmra.mxu0 %v1205
      %v1340 = vpop.f32.mrf.mxu0
      %v1341 = vadd.f32 0.0, %v1340
      %1342 = vdwg.mxu0
      %v1343 = vrcp.pop %v1321
      %v1344 = vrcp.pop %v1341
      %v1345 = vmul.f32 %v1160, %v1343
      %v1346 = vmul.f32 %v1162, %v1344
      %1347 = vst [vmem:[%s255] sm:$0xff] %v1345
      %1348 = vst [vmem:[%s255 + $0x8] sm:$0xff] %v1346
      %s1349 = smul.u32 2, %s20
      %p1350 = scmp.lt.s32.totalorder %s19, 1
      %s1351 = scalar_select %p1350, %s19, 1
      %p1352 = scmp.lt.s32.totalorder %s1349, 1
      %s1353 = scalar_select %p1352, %s1349, 1
      %s1354 = smul.addr %s1351, 2
      %s1355 = sadd.s32 %s1353, %s1354
      %s1356 = smul.addr %s1355, 8
      %s1357 = scalar_lea.vmem %s4, %s1356
      // Predicated region
      $region37: #{self_attention.1} parent=35 // pred_check
        %p1358 = pneg %p143
      $region38: #{self_attention.1} parent=35 // pred_check_branch
        %1360 = sbr.rel (%p1358) target = $region40
      $region39: #{self_attention.1} parent=35 // pred_region
        %s1361 = smul.u32 2, %s20
      $region40: #{self_attention.1} parent=35 // pred_fallthru
        _
    $region36: #{self_attention.1} parent=5 // pred_fallthru
      _
    %p1362 = scmp.le.s32.totalorder 2, %s10
    // Predicated region
    $region41: #{self_attention.1} parent=5 // pred_check
      %p1363 = pneg %p1362
    $region42: #{self_attention.1} parent=5 // pred_check_branch
      %1365 = sbr.rel (%p1363) target = $region44
    $region43: #{self_attention.1} parent=5 // pred_region
      %s1366 = ssub.s32 %s10, 2
      // Predicated region
      $region45: #{self_attention.1} parent=43 // pred_check
        %p1367 = pneg %p149
      $region46: #{self_attention.1} parent=43 // pred_check_branch
        %1369 = sbr.rel (%p1367) target = $region48
      $region47: #{self_attention.1} parent=43 // pred_region
        %s1370 = smul.u32 2, %s22
        %p1371 = scmp.lt.s32.totalorder %s21, 1
        %s1372 = scalar_select %p1371, %s21, 1
        %p1373 = scmp.lt.s32.totalorder %s1370, 1
        %s1374 = scalar_select %p1373, %s1370, 1
        %s1375 = smul.addr %s1372, 2
        %s1376 = sadd.s32 %s1374, %s1375
        %s1377 = smul.addr %s1376, 8
        %s1378 = scalar_lea.vmem %s4, %s1377
      $region48: #{self_attention.1} parent=43 // pred_fallthru
        _
    $region44: #{self_attention.1} parent=5 // pred_fallthru
      _
  $region6: #{self_attention.1} parent=0 // loop_footer
    %s14 = sadd.s32 1, %s10
  $region7: #{self_attention.1} parent=0 // loop_footer_branch
    %9 = sbr.rel target = $region3
  $region8: #{self_attention.1} parent=0 // loop_exit
    _

</llo_original>
